<compile_context>
chip_gen: v7x
topology: tpu7x:2x2x1
jax: 0.10.0
libtpu: 0.0.40
codegen_flags: <defaults>
</compile_context>

<pallas_src>
import jax
import jax.numpy as jnp
from jax.experimental import pallas as pl
from jax.experimental.pallas import tpu as pltpu


def coordgate_kernel(pos_ref, x_ref,
                     w0t_ref, b0_ref, w1t_ref, b1_ref,
                     wct_ref, bc_ref,
                     o_ref, gate_ref):
    """One (spatial-tile, batch-block) grid step. Channels on sublanes, spatial on lanes.

    pos_ref : (2, TS)              w0t_ref: (C_in, 2)      b0_ref: (C_in, 1)
    x_ref   : (TB, C_in, TS)       w1t_ref: (C_in, C_in)   b1_ref: (C_in, 1)
    o_ref   : (TB, C_out, TS)      wct_ref: (C_out, C_in)  bc_ref: (C_out, 1)
    gate_ref: (C_in, TS) VMEM scratch, persists across the (innermost) batch axis.
    """
    tile_b, c_in, _ = x_ref.shape

    # The gate depends only on spatial position -> compute it once per spatial
    # tile (batch is the innermost grid axis) and cache it in VMEM scratch.
    @pl.when(pl.program_id(1) == 0)
    def _():
        pos_t = pos_ref[...]                                      # (2, TS)
        # encoder linear0: (C_in, 2) @ (2, TS), unrolled on the VPU
        enc = b0_ref[...] + w0t_ref[:, 0:1] * pos_t[0:1, :]
        enc = enc + w0t_ref[:, 1:2] * pos_t[1:2, :]               # (C_in, TS)
        # encoder linear1: (C_in, C_in) @ (C_in, TS), unrolled on the VPU
        enc2 = b1_ref[...] + w1t_ref[:, 0:1] * enc[0:1, :]
        for j in range(1, c_in):
            enc2 = enc2 + w1t_ref[:, j:j + 1] * enc[j:j + 1, :]
        gate_ref[...] = jnp.maximum(enc2, 0.0)                    # relu

    # Hoist loop-invariant loads out of the per-batch loop.
    gate = gate_ref[...]                                          # (C_in, TS)
    bc = bc_ref[...]                                              # (C_out, 1)
    wc_cols = [wct_ref[:, ci:ci + 1] for ci in range(c_in)]       # (C_out, 1) each

    # 1x1 conv == (C_out, C_in) @ (C_in, TS). C_in/C_out are tiny (4), so the
    # contraction is unrolled as broadcast multiply-adds on the VPU, per batch
    # element of this batch block (static, unrolled loop).
    for b in range(tile_b):
        gated = x_ref[b] * gate                                   # (C_in, TS)
        out = bc + wc_cols[0] * gated[0:1, :]
        for ci in range(1, c_in):
            out = out + wc_cols[ci] * gated[ci:ci + 1, :]
        o_ref[b] = out.astype(o_ref.dtype)                        # lane-dense store


def _pick_spatial_tile(hw, cap):
    """Largest legal spatial tile: whole extent if it fits, else the largest
    128-multiple divisor of hw that is <= cap."""
    if hw <= cap:
        return hw
    best = None
    t = 128
    while t <= cap:
        if hw % t == 0:
            best = t
        t += 128
    # TODO(synk): ragged spatial extents with no 128-multiple divisor fall back
    # to a single full-extent block; add a masked last tile if that ever
    # pressures VMEM for huge images.
    return best if best is not None else hw


def _pick_batch_tile(n, bytes_per_batch, fixed_bytes, budget):
    """Largest divisor of n whose per-step VMEM footprint fits the budget."""
    max_tb = max(1, int((budget - fixed_bytes) // max(bytes_per_batch, 1)))
    tb = 1
    for d in range(1, n + 1):
        if n % d == 0 and d <= max_tb:
            tb = d
    return tb


def coordgate_forward(x_nchw, pos, w0, b0, w1, b1, wc, bc, *,
                      max_tile_s=32768, vmem_budget_bytes=12 * 1024 * 1024):
    """CoordGate('pos') forward.

    x_nchw: (N, C_in, H, W) f32
    pos:    (H*W, 2) f32 (torch meshgrid 'ij' order)
    w0:(2,C_in) b0:(1,C_in) w1:(C_in,C_in) b1:(1,C_in)  -- encoder Linears (in,out)
    wc:(C_in,C_out) bc:(1,C_out)                        -- 1x1 conv (in,out)
    Returns (N, C_out, H, W) f32.
    """
    N, C_in, H, W = x_nchw.shape
    C_out = wc.shape[1]
    HW = H * W

    tile_s = _pick_spatial_tile(HW, max_tile_s)
    num_s = HW // tile_s

    itemsize = 4
    # double-buffered x block + out block per batch element per step
    bytes_per_batch = 2 * (C_in + C_out) * tile_s * itemsize
    # gate scratch + double-buffered pos block (weights are negligible)
    fixed_bytes = (C_in * tile_s + 2 * 2 * tile_s) * itemsize
    tile_b = _pick_batch_tile(N, bytes_per_batch, fixed_bytes, vmem_budget_bytes)
    num_b = N // tile_b

    # NCHW-native flattening: pure reshapes, no HBM-pass transposes of x.
    x_flat = x_nchw.reshape(N, C_in, HW)
    pos_t = pos.T                              # (2, HW)    -- tiny
    w0t = w0.T                                 # (C_in, 2)
    w1t = w1.T                                 # (C_in, C_in)
    wct = wc.T                                 # (C_out, C_in)
    b0c = b0.reshape(C_in, 1)
    b1c = b1.reshape(C_in, 1)
    bcc = bc.reshape(C_out, 1)

    cost = pl.CostEstimate(
        flops=(2 * N * HW * C_in * C_out            # 1x1 conv
               + N * HW * C_in                      # gating multiply
               + HW * (2 * 2 * C_in + 2 * C_in * C_in)),  # encoder MLP (once)
        transcendentals=0,
        bytes_accessed=4 * (N * HW * (C_in + C_out) + 2 * HW),
    )

    out_flat = pl.pallas_call(
        coordgate_kernel,
        out_shape=jax.ShapeDtypeStruct((N, C_out, HW), jnp.float32),
        grid=(num_s, num_b),                        # batch innermost -> gate reuse
        in_specs=[
            pl.BlockSpec((2, tile_s), lambda s, b: (0, s)),                 # pos^T
            pl.BlockSpec((tile_b, C_in, tile_s), lambda s, b: (b, 0, s)),   # x
            pl.BlockSpec((C_in, 2), lambda s, b: (0, 0)),                   # w0^T
            pl.BlockSpec((C_in, 1), lambda s, b: (0, 0)),                   # b0
            pl.BlockSpec((C_in, C_in), lambda s, b: (0, 0)),                # w1^T
            pl.BlockSpec((C_in, 1), lambda s, b: (0, 0)),                   # b1
            pl.BlockSpec((C_out, C_in), lambda s, b: (0, 0)),               # wc^T
            pl.BlockSpec((C_out, 1), lambda s, b: (0, 0)),                  # bc
        ],
        out_specs=pl.BlockSpec((tile_b, C_out, tile_s), lambda s, b: (b, 0, s)),
        scratch_shapes=[pltpu.VMEM((C_in, tile_s), jnp.float32)],           # cached gate
        compiler_params=pltpu.CompilerParams(
            dimension_semantics=("parallel", "arbitrary")),
        cost_estimate=cost,
    )(pos_t, x_flat, w0t, b0c, w1t, b1c, wct, bcc)

    return out_flat.reshape(N, C_out, H, W)


def make_pos(H, W):
    # torch: meshgrid(linspace(-1,1,H), linspace(-1,1,W), indexing='ij'), stack(-1), view(-1,2)
    xc = jnp.linspace(-1.0, 1.0, H)
    yc = jnp.linspace(-1.0, 1.0, W)
    gx, gy = jnp.meshgrid(xc, yc, indexing="ij")
    return jnp.stack([gx, gy], axis=-1).reshape(-1, 2).astype(jnp.float32)


def reference_forward(x_nchw, pos, w0, b0, w1, b1, wc, bc):
    N, C_in, H, W = x_nchw.shape
    enc = pos @ w0 + b0
    enc = enc @ w1 + b1
    gate = jnp.maximum(enc, 0.0).reshape(1, H, W, C_in).transpose(0, 3, 1, 2)
    y = x_nchw * gate
    out = jnp.einsum("bchw,co->bohw", y, wc) + bc.reshape(1, -1, 1, 1)
    return out


if __name__ == "__main__":
    # module config: enc_channels=4, out_channels=4, size=[16,16], enctype='pos',
    # encoding_layers=2
    N, C_in, C_out, H, W = 2, 4, 4, 16, 16

    key = jax.random.PRNGKey(0)
    ks = jax.random.split(key, 8)

    # deterministic parameter init (torch Linear/Conv default-style uniform)
    def uinit(k, shape, fan_in):
        bound = 1.0 / jnp.sqrt(fan_in)
        return jax.random.uniform(k, shape, jnp.float32, -bound, bound)

    w0 = uinit(ks[0], (2, C_in), 2)           # Linear(2, enc_channels), stored (in, out)
    b0 = uinit(ks[1], (1, C_in), 2)
    w1 = uinit(ks[2], (C_in, C_in), C_in)     # Linear(enc_channels, enc_channels)
    b1 = uinit(ks[3], (1, C_in), C_in)
    wc = uinit(ks[4], (C_in, C_out), C_in)    # Conv2d 1x1 weight, stored (C_in, C_out)
    bc = uinit(ks[5], (1, C_out), C_in)

    x = jax.random.normal(ks[6], (N, C_in, H, W), jnp.float32)
    pos = make_pos(H, W)

    out = coordgate_forward(x, pos, w0, b0, w1, b1, wc, bc)
    out = jax.block_until_ready(out)

    ref = reference_forward(x, pos, w0, b0, w1, b1, wc, bc)
    assert out.shape == (N, C_out, H, W)
    assert jnp.allclose(out, ref, atol=1e-5, rtol=1e-5), "mismatch vs reference"

    print("KERNEL_OK")
</pallas_src>

<mosaic_0001>
module attributes {stable_mosaic.version = 11 : i64} {
  func.func @coordgate_kernel(%arg0: i32, %arg1: i32, %arg2: memref<2x256xf32, #tpu.memory_space<vmem>>, %arg3: memref<2x4x256xf32, #tpu.memory_space<vmem>>, %arg4: memref<4x2xf32, #tpu.memory_space<vmem>>, %arg5: memref<4x1xf32, #tpu.memory_space<vmem>>, %arg6: memref<4x4xf32, #tpu.memory_space<vmem>>, %arg7: memref<4x1xf32, #tpu.memory_space<vmem>>, %arg8: memref<4x4xf32, #tpu.memory_space<vmem>>, %arg9: memref<4x1xf32, #tpu.memory_space<vmem>>, %arg10: memref<2x4x256xf32, #tpu.memory_space<vmem>>, %arg11: memref<4x256xf32, #tpu.memory_space<vmem>>) attributes {dimension_semantics = [#tpu.dimension_semantics<parallel>, #tpu.dimension_semantics<arbitrary>], iteration_bounds = array<i64: 1, 1>, scalar_prefetch = 0 : i64, scratch_operands = 1 : i64, tpu.core_type = #tpu.core_type<tc>, window_params = [{transform_indices = @transform_0, window_bounds = array<i64: 2, 256>}, {transform_indices = @transform_1, window_bounds = array<i64: 2, 4, 256>}, {pipeline_mode = #tpu.pipeline_mode<synchronous>, transform_indices = @transform_2, window_bounds = array<i64: 4, 2>}, {pipeline_mode = #tpu.pipeline_mode<synchronous>, transform_indices = @transform_3, window_bounds = array<i64: 4, 1>}, {pipeline_mode = #tpu.pipeline_mode<synchronous>, transform_indices = @transform_4, window_bounds = array<i64: 4, 4>}, {pipeline_mode = #tpu.pipeline_mode<synchronous>, transform_indices = @transform_5, window_bounds = array<i64: 4, 1>}, {pipeline_mode = #tpu.pipeline_mode<synchronous>, transform_indices = @transform_6, window_bounds = array<i64: 4, 4>}, {pipeline_mode = #tpu.pipeline_mode<synchronous>, transform_indices = @transform_7, window_bounds = array<i64: 4, 1>}, {transform_indices = @transform_8, window_bounds = array<i64: 2, 4, 256>}]} {
    %c0_i32 = arith.constant 0 : i32
    %0 = arith.cmpi eq, %arg1, %c0_i32 : i32
    %1 = arith.extui %0 : i1 to i32
    %c0_i32_0 = arith.constant 0 : i32
    %2 = arith.cmpi ne, %1, %c0_i32_0 : i32
    scf.if %2 {
      %c0_21 = arith.constant 0 : index
      %c0_22 = arith.constant 0 : index
      %63 = vector.load %arg2[%c0_21, %c0_22] : memref<2x256xf32, #tpu.memory_space<vmem>>, vector<2x256xf32>
      %c0_23 = arith.constant 0 : index
      %c0_24 = arith.constant 0 : index
      %64 = vector.load %arg5[%c0_23, %c0_24] : memref<4x1xf32, #tpu.memory_space<vmem>>, vector<4x1xf32>
      %c0_25 = arith.constant 0 : index
      %c0_26 = arith.constant 0 : index
      %65 = vector.load %arg4[%c0_25, %c0_26] : memref<4x2xf32, #tpu.memory_space<vmem>>, vector<4x1xf32>
      %66 = vector.extract_strided_slice %63 {offsets = [0, 0], sizes = [1, 256], strides = [1, 1]} : vector<2x256xf32> to vector<1x256xf32>
      %67 = vector.broadcast %65 : vector<4x1xf32> to vector<4x256xf32>
      %68 = vector.broadcast %66 : vector<1x256xf32> to vector<4x256xf32>
      %69 = arith.mulf %67, %68 : vector<4x256xf32>
      %70 = vector.broadcast %64 : vector<4x1xf32> to vector<4x256xf32>
      %71 = arith.addf %70, %69 : vector<4x256xf32>
      %c0_27 = arith.constant 0 : index
      %c1_28 = arith.constant 1 : index
      %72 = vector.load %arg4[%c0_27, %c1_28] : memref<4x2xf32, #tpu.memory_space<vmem>>, vector<4x1xf32>
      %73 = vector.extract_strided_slice %63 {offsets = [1, 0], sizes = [1, 256], strides = [1, 1]} : vector<2x256xf32> to vector<1x256xf32>
      %74 = vector.broadcast %72 : vector<4x1xf32> to vector<4x256xf32>
      %75 = vector.broadcast %73 : vector<1x256xf32> to vector<4x256xf32>
      %76 = arith.mulf %74, %75 : vector<4x256xf32>
      %77 = arith.addf %71, %76 : vector<4x256xf32>
      %c0_29 = arith.constant 0 : index
      %c0_30 = arith.constant 0 : index
      %78 = vector.load %arg7[%c0_29, %c0_30] : memref<4x1xf32, #tpu.memory_space<vmem>>, vector<4x1xf32>
      %c0_31 = arith.constant 0 : index
      %c0_32 = arith.constant 0 : index
      %79 = vector.load %arg6[%c0_31, %c0_32] : memref<4x4xf32, #tpu.memory_space<vmem>>, vector<4x1xf32>
      %80 = vector.extract_strided_slice %77 {offsets = [0, 0], sizes = [1, 256], strides = [1, 1]} : vector<4x256xf32> to vector<1x256xf32>
      %81 = vector.broadcast %79 : vector<4x1xf32> to vector<4x256xf32>
      %82 = vector.broadcast %80 : vector<1x256xf32> to vector<4x256xf32>
      %83 = arith.mulf %81, %82 : vector<4x256xf32>
      %84 = vector.broadcast %78 : vector<4x1xf32> to vector<4x256xf32>
      %85 = arith.addf %84, %83 : vector<4x256xf32>
      %c0_33 = arith.constant 0 : index
      %c1_34 = arith.constant 1 : index
      %86 = vector.load %arg6[%c0_33, %c1_34] : memref<4x4xf32, #tpu.memory_space<vmem>>, vector<4x1xf32>
      %87 = vector.extract_strided_slice %77 {offsets = [1, 0], sizes = [1, 256], strides = [1, 1]} : vector<4x256xf32> to vector<1x256xf32>
      %88 = vector.broadcast %86 : vector<4x1xf32> to vector<4x256xf32>
      %89 = vector.broadcast %87 : vector<1x256xf32> to vector<4x256xf32>
      %90 = arith.mulf %88, %89 : vector<4x256xf32>
      %91 = arith.addf %85, %90 : vector<4x256xf32>
      %c0_35 = arith.constant 0 : index
      %c2_36 = arith.constant 2 : index
      %92 = vector.load %arg6[%c0_35, %c2_36] : memref<4x4xf32, #tpu.memory_space<vmem>>, vector<4x1xf32>
      %93 = vector.extract_strided_slice %77 {offsets = [2, 0], sizes = [1, 256], strides = [1, 1]} : vector<4x256xf32> to vector<1x256xf32>
      %94 = vector.broadcast %92 : vector<4x1xf32> to vector<4x256xf32>
      %95 = vector.broadcast %93 : vector<1x256xf32> to vector<4x256xf32>
      %96 = arith.mulf %94, %95 : vector<4x256xf32>
      %97 = arith.addf %91, %96 : vector<4x256xf32>
      %c0_37 = arith.constant 0 : index
      %c3_38 = arith.constant 3 : index
      %98 = vector.load %arg6[%c0_37, %c3_38] : memref<4x4xf32, #tpu.memory_space<vmem>>, vector<4x1xf32>
      %99 = vector.extract_strided_slice %77 {offsets = [3, 0], sizes = [1, 256], strides = [1, 1]} : vector<4x256xf32> to vector<1x256xf32>
      %100 = vector.broadcast %98 : vector<4x1xf32> to vector<4x256xf32>
      %101 = vector.broadcast %99 : vector<1x256xf32> to vector<4x256xf32>
      %102 = arith.mulf %100, %101 : vector<4x256xf32>
      %103 = arith.addf %97, %102 : vector<4x256xf32>
      %cst = arith.constant 0.000000e+00 : f32
      %104 = vector.broadcast %cst : f32 to vector<4x256xf32>
      %105 = arith.maximumf %103, %104 : vector<4x256xf32>
      %c0_39 = arith.constant 0 : index
      %c0_40 = arith.constant 0 : index
      %106 = vector.load %arg11[%c0_39, %c0_40] : memref<4x256xf32, #tpu.memory_space<vmem>>, vector<4x256xf32>
      tpu.vector_store %arg11[%c0_39, %c0_40], %105 {strides = array<i32>} : memref<4x256xf32, #tpu.memory_space<vmem>>, vector<4x256xf32>,
    } else {
    }
    %c0 = arith.constant 0 : index
    %c0_1 = arith.constant 0 : index
    %3 = vector.load %arg11[%c0, %c0_1] : memref<4x256xf32, #tpu.memory_space<vmem>>, vector<4x256xf32>
    %c0_2 = arith.constant 0 : index
    %c0_3 = arith.constant 0 : index
    %4 = vector.load %arg9[%c0_2, %c0_3] : memref<4x1xf32, #tpu.memory_space<vmem>>, vector<4x1xf32>
    %c0_4 = arith.constant 0 : index
    %c0_5 = arith.constant 0 : index
    %5 = vector.load %arg8[%c0_4, %c0_5] : memref<4x4xf32, #tpu.memory_space<vmem>>, vector<4x1xf32>
    %c0_6 = arith.constant 0 : index
    %c1 = arith.constant 1 : index
    %6 = vector.load %arg8[%c0_6, %c1] : memref<4x4xf32, #tpu.memory_space<vmem>>, vector<4x1xf32>
    %c0_7 = arith.constant 0 : index
    %c2 = arith.constant 2 : index
    %7 = vector.load %arg8[%c0_7, %c2] : memref<4x4xf32, #tpu.memory_space<vmem>>, vector<4x1xf32>
    %c0_8 = arith.constant 0 : index
    %c3 = arith.constant 3 : index
    %8 = vector.load %arg8[%c0_8, %c3] : memref<4x4xf32, #tpu.memory_space<vmem>>, vector<4x1xf32>
    %c0_9 = arith.constant 0 : index
    %c0_10 = arith.constant 0 : index
    %c0_11 = arith.constant 0 : index
    %9 = vector.load %arg3[%c0_9, %c0_10, %c0_11] : memref<2x4x256xf32, #tpu.memory_space<vmem>>, vector<1x4x256xf32>
    %10 = vector.shape_cast %9 : vector<1x4x256xf32> to vector<4x256xf32>
    %11 = arith.mulf %10, %3 : vector<4x256xf32>
    %12 = vector.extract_strided_slice %11 {offsets = [0, 0], sizes = [1, 256], strides = [1, 1]} : vector<4x256xf32> to vector<1x256xf32>
    %13 = vector.broadcast %5 : vector<4x1xf32> to vector<4x256xf32>
    %14 = vector.broadcast %12 : vector<1x256xf32> to vector<4x256xf32>
    %15 = arith.mulf %13, %14 : vector<4x256xf32>
    %16 = vector.broadcast %4 : vector<4x1xf32> to vector<4x256xf32>
    %17 = arith.addf %16, %15 : vector<4x256xf32>
    %18 = vector.extract_strided_slice %11 {offsets = [1, 0], sizes = [1, 256], strides = [1, 1]} : vector<4x256xf32> to vector<1x256xf32>
    %19 = vector.broadcast %6 : vector<4x1xf32> to vector<4x256xf32>
    %20 = vector.broadcast %18 : vector<1x256xf32> to vector<4x256xf32>
    %21 = arith.mulf %19, %20 : vector<4x256xf32>
    %22 = arith.addf %17, %21 : vector<4x256xf32>
    %23 = vector.extract_strided_slice %11 {offsets = [2, 0], sizes = [1, 256], strides = [1, 1]} : vector<4x256xf32> to vector<1x256xf32>
    %24 = vector.broadcast %7 : vector<4x1xf32> to vector<4x256xf32>
    %25 = vector.broadcast %23 : vector<1x256xf32> to vector<4x256xf32>
    %26 = arith.mulf %24, %25 : vector<4x256xf32>
    %27 = arith.addf %22, %26 : vector<4x256xf32>
    %28 = vector.extract_strided_slice %11 {offsets = [3, 0], sizes = [1, 256], strides = [1, 1]} : vector<4x256xf32> to vector<1x256xf32>
    %29 = vector.broadcast %8 : vector<4x1xf32> to vector<4x256xf32>
    %30 = vector.broadcast %28 : vector<1x256xf32> to vector<4x256xf32>
    %31 = arith.mulf %29, %30 : vector<4x256xf32>
    %32 = arith.addf %27, %31 : vector<4x256xf32>
    %c0_12 = arith.constant 0 : index
    %c0_13 = arith.constant 0 : index
    %c0_14 = arith.constant 0 : index
    %33 = vector.load %arg10[%c0_12, %c0_13, %c0_14] : memref<2x4x256xf32, #tpu.memory_space<vmem>>, vector<1x4x256xf32>
    %34 = vector.shape_cast %33 : vector<1x4x256xf32> to vector<4x256xf32>
    %35 = vector.shape_cast %32 : vector<4x256xf32> to vector<1x4x256xf32>
    tpu.vector_store %arg10[%c0_12, %c0_13, %c0_14], %35 {strides = array<i32>} : memref<2x4x256xf32, #tpu.memory_space<vmem>>, vector<1x4x256xf32>,
    %c1_15 = arith.constant 1 : index
    %c0_16 = arith.constant 0 : index
    %c0_17 = arith.constant 0 : index
    %36 = vector.load %arg3[%c1_15, %c0_16, %c0_17] : memref<2x4x256xf32, #tpu.memory_space<vmem>>, vector<1x4x256xf32>
    %37 = vector.shape_cast %36 : vector<1x4x256xf32> to vector<4x256xf32>
    %38 = arith.mulf %37, %3 : vector<4x256xf32>
    %39 = vector.extract_strided_slice %38 {offsets = [0, 0], sizes = [1, 256], strides = [1, 1]} : vector<4x256xf32> to vector<1x256xf32>
    %40 = vector.broadcast %5 : vector<4x1xf32> to vector<4x256xf32>
    %41 = vector.broadcast %39 : vector<1x256xf32> to vector<4x256xf32>
    %42 = arith.mulf %40, %41 : vector<4x256xf32>
    %43 = vector.broadcast %4 : vector<4x1xf32> to vector<4x256xf32>
    %44 = arith.addf %43, %42 : vector<4x256xf32>
    %45 = vector.extract_strided_slice %38 {offsets = [1, 0], sizes = [1, 256], strides = [1, 1]} : vector<4x256xf32> to vector<1x256xf32>
    %46 = vector.broadcast %6 : vector<4x1xf32> to vector<4x256xf32>
    %47 = vector.broadcast %45 : vector<1x256xf32> to vector<4x256xf32>
    %48 = arith.mulf %46, %47 : vector<4x256xf32>
    %49 = arith.addf %44, %48 : vector<4x256xf32>
    %50 = vector.extract_strided_slice %38 {offsets = [2, 0], sizes = [1, 256], strides = [1, 1]} : vector<4x256xf32> to vector<1x256xf32>
    %51 = vector.broadcast %7 : vector<4x1xf32> to vector<4x256xf32>
    %52 = vector.broadcast %50 : vector<1x256xf32> to vector<4x256xf32>
    %53 = arith.mulf %51, %52 : vector<4x256xf32>
    %54 = arith.addf %49, %53 : vector<4x256xf32>
    %55 = vector.extract_strided_slice %38 {offsets = [3, 0], sizes = [1, 256], strides = [1, 1]} : vector<4x256xf32> to vector<1x256xf32>
    %56 = vector.broadcast %8 : vector<4x1xf32> to vector<4x256xf32>
    %57 = vector.broadcast %55 : vector<1x256xf32> to vector<4x256xf32>
    %58 = arith.mulf %56, %57 : vector<4x256xf32>
    %59 = arith.addf %54, %58 : vector<4x256xf32>
    %c1_18 = arith.constant 1 : index
    %c0_19 = arith.constant 0 : index
    %c0_20 = arith.constant 0 : index
    %60 = vector.load %arg10[%c1_18, %c0_19, %c0_20] : memref<2x4x256xf32, #tpu.memory_space<vmem>>, vector<1x4x256xf32>
    %61 = vector.shape_cast %60 : vector<1x4x256xf32> to vector<4x256xf32>
    %62 = vector.shape_cast %59 : vector<4x256xf32> to vector<1x4x256xf32>
    tpu.vector_store %arg10[%c1_18, %c0_19, %c0_20], %62 {strides = array<i32>} : memref<2x4x256xf32, #tpu.memory_space<vmem>>, vector<1x4x256xf32>,
    return
  }
  func.func @transform_0(%arg0: i32, %arg1: i32) -> (i32, i32) {
    %c0_i32 = arith.constant 0 : i32
    %c0_i32_0 = arith.constant 0 : i32
    return %c0_i32, %arg0 : i32, i32
  }
  func.func @transform_1(%arg0: i32, %arg1: i32) -> (i32, i32, i32) {
    %c0_i32 = arith.constant 0 : i32
    %c0_i32_0 = arith.constant 0 : i32
    return %arg1, %c0_i32, %arg0 : i32, i32, i32
  }
  func.func @transform_2(%arg0: i32, %arg1: i32) -> (i32, i32) {
    %c0_i32 = arith.constant 0 : i32
    %c0_i32_0 = arith.constant 0 : i32
    %c0_i32_1 = arith.constant 0 : i32
    return %c0_i32, %c0_i32_0 : i32, i32
  }
  func.func @transform_3(%arg0: i32, %arg1: i32) -> (i32, i32) {
    %c0_i32 = arith.constant 0 : i32
    %c0_i32_0 = arith.constant 0 : i32
    %c0_i32_1 = arith.constant 0 : i32
    return %c0_i32, %c0_i32_0 : i32, i32
  }
  func.func @transform_4(%arg0: i32, %arg1: i32) -> (i32, i32) {
    %c0_i32 = arith.constant 0 : i32
    %c0_i32_0 = arith.constant 0 : i32
    %c0_i32_1 = arith.constant 0 : i32
    return %c0_i32, %c0_i32_0 : i32, i32
  }
  func.func @transform_5(%arg0: i32, %arg1: i32) -> (i32, i32) {
    %c0_i32 = arith.constant 0 : i32
    %c0_i32_0 = arith.constant 0 : i32
    %c0_i32_1 = arith.constant 0 : i32
    return %c0_i32, %c0_i32_0 : i32, i32
  }
  func.func @transform_6(%arg0: i32, %arg1: i32) -> (i32, i32) {
    %c0_i32 = arith.constant 0 : i32
    %c0_i32_0 = arith.constant 0 : i32
    %c0_i32_1 = arith.constant 0 : i32
    return %c0_i32, %c0_i32_0 : i32, i32
  }
  func.func @transform_7(%arg0: i32, %arg1: i32) -> (i32, i32) {
    %c0_i32 = arith.constant 0 : i32
    %c0_i32_0 = arith.constant 0 : i32
    %c0_i32_1 = arith.constant 0 : i32
    return %c0_i32, %c0_i32_0 : i32, i32
  }
  func.func @transform_8(%arg0: i32, %arg1: i32) -> (i32, i32, i32) {
    %c0_i32 = arith.constant 0 : i32
    %c0_i32_0 = arith.constant 0 : i32
    return %arg1, %c0_i32, %arg0 : i32, i32, i32
  }
}

</mosaic_0001>

<llo_original>
// kernel: tpu_custom_call.1
$region0: #{tpu_custom_call.1}
  #allocation0 [shape = 'u32[]', space=smem, size = 0x4, offset = 0x4, fixed_abs, tag = 'smem constant byte address 0x4 - core index']
  #allocation1 [shape = 'u32[144,128]{1,0:T(1,128)}', space=vmem, size = 0x12000, scoped, tag = 'internal scratch']
  #allocation2 [shape = 'f32[4,256]{1,0:T(4,128)}', space=vmem, size = 0x1000, scoped, tag = 'scratch operand']
  %s0 = inlined_call_operand.vmem [shape: f32[2,256], index: 0, kind: input, shape index: {}]
  %s1 = inlined_call_operand.vmem [shape: f32[2,4,256], index: 1, kind: input, shape index: {}]
  %s2 = inlined_call_operand.vmem [shape: f32[4,2], index: 2, kind: input, shape index: {}]
  %s3 = inlined_call_operand.vmem [shape: f32[4,1], index: 3, kind: input, shape index: {}]
  %s4 = inlined_call_operand.vmem [shape: f32[4,4], index: 4, kind: input, shape index: {}]
  %s5 = inlined_call_operand.vmem [shape: f32[4,1], index: 5, kind: input, shape index: {}]
  %s6 = inlined_call_operand.vmem [shape: f32[4,4], index: 6, kind: input, shape index: {}]
  %s7 = inlined_call_operand.vmem [shape: f32[4,1], index: 7, kind: input, shape index: {}]
  %s8 = inlined_call_operand.hbm [shape: f32[2,4,256], index: 8, kind: output, shape index: {}]
  %s9 = sld [smem:[#allocation0]]
  $region46: #{tpu_custom_call.1} parent=0
    _
  %s11 = ssub.s32 1, %s9
  %s12 = scalar_select 0, %s11, %s9
  $region1: #{tpu_custom_call.1} parent=0
    #allocation3 [shape = 'u8[8192]{0}', space=vmem, size = 0x2000, scoped, tag = 'output window, operand 0, single buffered']
    #allocation4 [shape = 's32[1]{0}', space=sflag, size = 0x4, scoped, tag = 'scoped memory for tpu_custom_call.1']
    %13 = vsyncpa [#allocation4], 0
    // Predicated region
    $region2: #{tpu_custom_call.1} parent=1 // pred_check
      _
    $region3: #{tpu_custom_call.1} parent=1 // pred_check_branch
      %15 = sbr.rel (0) target = $region5
    $region4: #{tpu_custom_call.1} parent=1 // pred_region
      _
    $region5: #{tpu_custom_call.1} parent=1 // pred_fallthru
      _
    // Predicated region
    $region6: #{tpu_custom_call.1} parent=1 // pred_check
      _
    $region7: #{tpu_custom_call.1} parent=1 // pred_check_branch
      %17 = sbr.rel (0) target = $region9
    $region8: #{tpu_custom_call.1} parent=1 // pred_region
      _
    $region9: #{tpu_custom_call.1} parent=1 // pred_fallthru
      _
    // Predicated region
    $region10: #{tpu_custom_call.1} parent=1 // pred_check
      _
    $region11: #{tpu_custom_call.1} parent=1 // pred_check_branch
      %19 = sbr.rel (0) target = $region13
    $region12: #{tpu_custom_call.1} parent=1 // pred_region
      _
    $region13: #{tpu_custom_call.1} parent=1 // pred_fallthru
      _
    // Predicated region
    $region14: #{tpu_custom_call.1} parent=1 // pred_check
      _
    $region15: #{tpu_custom_call.1} parent=1 // pred_check_branch
      %21 = sbr.rel (0) target = $region17
    $region16: #{tpu_custom_call.1} parent=1 // pred_region
      _
    $region17: #{tpu_custom_call.1} parent=1 // pred_fallthru
      _
    // Predicated region
    $region18: #{tpu_custom_call.1} parent=1 // pred_check
      _
    $region19: #{tpu_custom_call.1} parent=1 // pred_check_branch
      %23 = sbr.rel (0) target = $region21
    $region20: #{tpu_custom_call.1} parent=1 // pred_region
      _
    $region21: #{tpu_custom_call.1} parent=1 // pred_fallthru
      _
    // Predicated region
    $region22: #{tpu_custom_call.1} parent=1 // pred_check
      _
    $region23: #{tpu_custom_call.1} parent=1 // pred_check_branch
      %25 = sbr.rel (0) target = $region25
    $region24: #{tpu_custom_call.1} parent=1 // pred_region
      _
    $region25: #{tpu_custom_call.1} parent=1 // pred_fallthru
      _
    // Predicated region
    $region26: #{tpu_custom_call.1} parent=1 // pred_check
      _
    $region27: #{tpu_custom_call.1} parent=1 // pred_check_branch
      %27 = sbr.rel (0) target = $region29
    $region28: #{tpu_custom_call.1} parent=1 // pred_region
      _
    $region29: #{tpu_custom_call.1} parent=1 // pred_fallthru
      _
    // Predicated region
    $region30: #{tpu_custom_call.1} parent=1 // pred_check
      _
    $region31: #{tpu_custom_call.1} parent=1 // pred_check_branch
      %29 = sbr.rel (0) target = $region33
    $region32: #{tpu_custom_call.1} parent=1 // pred_region
      _
    $region33: #{tpu_custom_call.1} parent=1 // pred_fallthru
      _
    %p30 = scmp.eq.s32.totalorder 0, 0
    // Predicated region
    $region34: #{tpu_custom_call.1} parent=1 // pred_check
      %p31 = pneg %p30
    $region35: #{tpu_custom_call.1} parent=1 // pred_check_branch
      %33 = sbr.rel (%p31) target = $region37
    $region36: #{tpu_custom_call.1} parent=1 // pred_region
      %v34 = vld [vmem:[%s0] sm:$0xf]
      %v35 = vld [vmem:[%s3] sm:$0xf]
      %v36 = vld [vmem:[%s2] sm:$0xf]
      %38 = vset.pattern.permute.xlu0 0
      %39 = vperm.xlu0 %38, %v36
      %v40 = vpop.permute.xlu0 %39
      %v43 = vlaneseq
      %v44 = vshrl.u32 %v43, 7
      %v45 = vsub.s32 0, %v44
      %v46 = vrot.slane %v34, %v45
      %v47 = vlaneseq
      %v48 = vshrl.u32 %v47, 7
      %v49 = vsub.s32 2, %v48
      %v50 = vrot.slane %v34, %v49
      %v53 = vlaneseq
      %v54 = vshrl.u32 %v53, 7
      %v55 = vsub.s32 0, %v54
      %v56 = vrot.slane %v46, %v55
      %v57 = vlaneseq
      %v58 = vshrl.u32 %v57, 7
      %v59 = vsub.s32 0, %v58
      %v60 = vrot.slane %v50, %v59
      %v61 = vmul.f32 %v40, %v56
      %v62 = vmul.f32 %v40, %v60
      %64 = vset.pattern.permute.xlu0 0
      %65 = vperm.xlu0 %64, %v35
      %v66 = vpop.permute.xlu0 %65
      %v68 = vadd.f32 %v66, %v61
      %v69 = vadd.f32 %v66, %v62
      %70 = vset.pattern.permute.xlu0 1
      %71 = vperm.xlu0 %70, %v36
      %v72 = vpop.permute.xlu0 %71
      %v74 = vlaneseq
      %v75 = vshrl.u32 %v74, 7
      %v76 = vsub.s32 1, %v75
      %v77 = vrot.slane %v34, %v76
      %v78 = vlaneseq
      %v79 = vshrl.u32 %v78, 7
      %v80 = vsub.s32 3, %v79
      %v81 = vrot.slane %v34, %v80
      %v84 = vlaneseq
      %v85 = vshrl.u32 %v84, 7
      %v86 = vsub.s32 1, %v85
      %v87 = vrot.slane %v77, %v86
      %v88 = vlaneseq
      %v89 = vshrl.u32 %v88, 7
      %v90 = vsub.s32 1, %v89
      %v91 = vrot.slane %v81, %v90
      %v92 = vmul.f32 %v72, %v87
      %v93 = vmul.f32 %v72, %v91
      %v94 = vadd.f32 %v68, %v92
      %v95 = vadd.f32 %v69, %v93
      %v96 = vld [vmem:[%s5] sm:$0xf]
      %v97 = vld [vmem:[%s4] sm:$0xf]
      %99 = vset.pattern.permute.xlu0 0
      %100 = vperm.xlu0 %99, %v97
      %v101 = vpop.permute.xlu0 %100
      %v103 = vlaneseq
      %v104 = vshrl.u32 %v103, 7
      %v105 = vsub.s32 0, %v104
      %v106 = vrot.slane %v94, %v105
      %v107 = vlaneseq
      %v108 = vshrl.u32 %v107, 7
      %v109 = vsub.s32 0, %v108
      %v110 = vrot.slane %v95, %v109
      %v111 = vmul.f32 %v101, %v106
      %v112 = vmul.f32 %v101, %v110
      %114 = vset.pattern.permute.xlu0 0
      %115 = vperm.xlu0 %114, %v96
      %v116 = vpop.permute.xlu0 %115
      %v118 = vadd.f32 %v116, %v111
      %v119 = vadd.f32 %v116, %v112
      %120 = vset.pattern.permute.xlu0 1
      %121 = vperm.xlu0 %120, %v97
      %v122 = vpop.permute.xlu0 %121
      %v124 = vlaneseq
      %v125 = vshrl.u32 %v124, 7
      %v126 = vsub.s32 1, %v125
      %v127 = vrot.slane %v94, %v126
      %v128 = vlaneseq
      %v129 = vshrl.u32 %v128, 7
      %v130 = vsub.s32 1, %v129
      %v131 = vrot.slane %v95, %v130
      %v132 = vmul.f32 %v122, %v127
      %v133 = vmul.f32 %v122, %v131
      %v134 = vadd.f32 %v118, %v132
      %v135 = vadd.f32 %v119, %v133
      %136 = vset.pattern.permute.xlu0 2
      %137 = vperm.xlu0 %136, %v97
      %v138 = vpop.permute.xlu0 %137
      %v140 = vlaneseq
      %v141 = vshrl.u32 %v140, 7
      %v142 = vsub.s32 2, %v141
      %v143 = vrot.slane %v94, %v142
      %v144 = vlaneseq
      %v145 = vshrl.u32 %v144, 7
      %v146 = vsub.s32 2, %v145
      %v147 = vrot.slane %v95, %v146
      %v148 = vmul.f32 %v138, %v143
      %v149 = vmul.f32 %v138, %v147
      %v150 = vadd.f32 %v134, %v148
      %v151 = vadd.f32 %v135, %v149
      %152 = vset.pattern.permute.xlu0 3
      %153 = vperm.xlu0 %152, %v97
      %v154 = vpop.permute.xlu0 %153
      %v156 = vlaneseq
      %v157 = vshrl.u32 %v156, 7
      %v158 = vsub.s32 3, %v157
      %v159 = vrot.slane %v94, %v158
      %v160 = vlaneseq
      %v161 = vshrl.u32 %v160, 7
      %v162 = vsub.s32 3, %v161
      %v163 = vrot.slane %v95, %v162
      %v164 = vmul.f32 %v154, %v159
      %v165 = vmul.f32 %v154, %v163
      %v166 = vadd.f32 %v150, %v164
      %v167 = vadd.f32 %v151, %v165
      %v168 = vmax.f32 %v166, 0.0
      %v169 = vmax.f32 %v167, 0.0
      %v172 = vcombine.low %v168, %v169
      %174 = vst [vmem:[#allocation2] sm:$0xff] %v172
    $region37: #{tpu_custom_call.1} parent=1 // pred_fallthru
      _
    %v175 = vld [vmem:[#allocation2] sm:$0xff]
    %v176 = vld [vmem:[%s7] sm:$0xf]
    %v177 = vld [vmem:[%s6] sm:$0xf]
    %v178 = vld [vmem:[%s1] sm:$0xff]
    %v179 = vmul.f32 %v178, %v175
    %181 = vset.pattern.permute.xlu0 0
    %182 = vperm.xlu0 %181, %v177
    %v183 = vpop.permute.xlu0 %182
    %v186 = vlaneseq
    %v187 = vshrl.u32 %v186, 7
    %v188 = vsub.s32 0, %v187
    %v189 = vrot.slane %v179, %v188
    %v190 = vlaneseq
    %v191 = vshrl.u32 %v190, 7
    %v192 = vsub.s32 4, %v191
    %v193 = vrot.slane %v179, %v192
    %v196 = vlaneseq
    %v197 = vshrl.u32 %v196, 7
    %v198 = vsub.s32 0, %v197
    %v199 = vrot.slane %v189, %v198
    %v200 = vlaneseq
    %v201 = vshrl.u32 %v200, 7
    %v202 = vsub.s32 0, %v201
    %v203 = vrot.slane %v193, %v202
    %v204 = vmul.f32 %v183, %v199
    %v205 = vmul.f32 %v183, %v203
    %207 = vset.pattern.permute.xlu0 0
    %208 = vperm.xlu0 %207, %v176
    %v209 = vpop.permute.xlu0 %208
    %v211 = vadd.f32 %v209, %v204
    %v212 = vadd.f32 %v209, %v205
    %213 = vset.pattern.permute.xlu0 1
    %214 = vperm.xlu0 %213, %v177
    %v215 = vpop.permute.xlu0 %214
    %v217 = vlaneseq
    %v218 = vshrl.u32 %v217, 7
    %v219 = vsub.s32 1, %v218
    %v220 = vrot.slane %v179, %v219
    %v221 = vlaneseq
    %v222 = vshrl.u32 %v221, 7
    %v223 = vsub.s32 5, %v222
    %v224 = vrot.slane %v179, %v223
    %v227 = vlaneseq
    %v228 = vshrl.u32 %v227, 7
    %v229 = vsub.s32 1, %v228
    %v230 = vrot.slane %v220, %v229
    %v231 = vlaneseq
    %v232 = vshrl.u32 %v231, 7
    %v233 = vsub.s32 1, %v232
    %v234 = vrot.slane %v224, %v233
    %v235 = vmul.f32 %v215, %v230
    %v236 = vmul.f32 %v215, %v234
    %v237 = vadd.f32 %v211, %v235
    %v238 = vadd.f32 %v212, %v236
    %239 = vset.pattern.permute.xlu0 2
    %240 = vperm.xlu0 %239, %v177
    %v241 = vpop.permute.xlu0 %240
    %v243 = vlaneseq
    %v244 = vshrl.u32 %v243, 7
    %v245 = vsub.s32 2, %v244
    %v246 = vrot.slane %v179, %v245
    %v247 = vlaneseq
    %v248 = vshrl.u32 %v247, 7
    %v249 = vsub.s32 6, %v248
    %v250 = vrot.slane %v179, %v249
    %v253 = vlaneseq
    %v254 = vshrl.u32 %v253, 7
    %v255 = vsub.s32 2, %v254
    %v256 = vrot.slane %v246, %v255
    %v257 = vlaneseq
    %v258 = vshrl.u32 %v257, 7
    %v259 = vsub.s32 2, %v258
    %v260 = vrot.slane %v250, %v259
    %v261 = vmul.f32 %v241, %v256
    %v262 = vmul.f32 %v241, %v260
    %v263 = vadd.f32 %v237, %v261
    %v264 = vadd.f32 %v238, %v262
    %265 = vset.pattern.permute.xlu0 3
    %266 = vperm.xlu0 %265, %v177
    %v267 = vpop.permute.xlu0 %266
    %v269 = vlaneseq
    %v270 = vshrl.u32 %v269, 7
    %v271 = vsub.s32 3, %v270
    %v272 = vrot.slane %v179, %v271
    %v273 = vlaneseq
    %v274 = vshrl.u32 %v273, 7
    %v275 = vsub.s32 7, %v274
    %v276 = vrot.slane %v179, %v275
    %v279 = vlaneseq
    %v280 = vshrl.u32 %v279, 7
    %v281 = vsub.s32 3, %v280
    %v282 = vrot.slane %v272, %v281
    %v283 = vlaneseq
    %v284 = vshrl.u32 %v283, 7
    %v285 = vsub.s32 3, %v284
    %v286 = vrot.slane %v276, %v285
    %v287 = vmul.f32 %v267, %v282
    %v288 = vmul.f32 %v267, %v286
    %v289 = vadd.f32 %v263, %v287
    %v290 = vadd.f32 %v264, %v288
    %v293 = vcombine.low %v289, %v290
    %295 = vst [vmem:[#allocation3] sm:$0xff] %v293
    %s296 = scalar_lea.vmem %s1, 8
    %v297 = vld [vmem:[%s296] sm:$0xff]
    %v298 = vmul.f32 %v297, %v175
    %v300 = vlaneseq
    %v301 = vshrl.u32 %v300, 7
    %v302 = vsub.s32 0, %v301
    %v303 = vrot.slane %v298, %v302
    %v304 = vlaneseq
    %v305 = vshrl.u32 %v304, 7
    %v306 = vsub.s32 4, %v305
    %v307 = vrot.slane %v298, %v306
    %v310 = vlaneseq
    %v311 = vshrl.u32 %v310, 7
    %v312 = vsub.s32 0, %v311
    %v313 = vrot.slane %v303, %v312
    %v314 = vlaneseq
    %v315 = vshrl.u32 %v314, 7
    %v316 = vsub.s32 0, %v315
    %v317 = vrot.slane %v307, %v316
    %v318 = vmul.f32 %v183, %v313
    %v319 = vmul.f32 %v183, %v317
    %v320 = vadd.f32 %v209, %v318
    %v321 = vadd.f32 %v209, %v319
    %v322 = vlaneseq
    %v323 = vshrl.u32 %v322, 7
    %v324 = vsub.s32 1, %v323
    %v325 = vrot.slane %v298, %v324
    %v326 = vlaneseq
    %v327 = vshrl.u32 %v326, 7
    %v328 = vsub.s32 5, %v327
    %v329 = vrot.slane %v298, %v328
    %v332 = vlaneseq
    %v333 = vshrl.u32 %v332, 7
    %v334 = vsub.s32 1, %v333
    %v335 = vrot.slane %v325, %v334
    %v336 = vlaneseq
    %v337 = vshrl.u32 %v336, 7
    %v338 = vsub.s32 1, %v337
    %v339 = vrot.slane %v329, %v338
    %v340 = vmul.f32 %v215, %v335
    %v341 = vmul.f32 %v215, %v339
    %v342 = vadd.f32 %v320, %v340
    %v343 = vadd.f32 %v321, %v341
    %v344 = vlaneseq
    %v345 = vshrl.u32 %v344, 7
    %v346 = vsub.s32 2, %v345
    %v347 = vrot.slane %v298, %v346
    %v348 = vlaneseq
    %v349 = vshrl.u32 %v348, 7
    %v350 = vsub.s32 6, %v349
    %v351 = vrot.slane %v298, %v350
    %v354 = vlaneseq
    %v355 = vshrl.u32 %v354, 7
    %v356 = vsub.s32 2, %v355
    %v357 = vrot.slane %v347, %v356
    %v358 = vlaneseq
    %v359 = vshrl.u32 %v358, 7
    %v360 = vsub.s32 2, %v359
    %v361 = vrot.slane %v351, %v360
    %v362 = vmul.f32 %v241, %v357
    %v363 = vmul.f32 %v241, %v361
    %v364 = vadd.f32 %v342, %v362
    %v365 = vadd.f32 %v343, %v363
    %v366 = vlaneseq
    %v367 = vshrl.u32 %v366, 7
    %v368 = vsub.s32 3, %v367
    %v369 = vrot.slane %v298, %v368
    %v370 = vlaneseq
    %v371 = vshrl.u32 %v370, 7
    %v372 = vsub.s32 7, %v371
    %v373 = vrot.slane %v298, %v372
    %v376 = vlaneseq
    %v377 = vshrl.u32 %v376, 7
    %v378 = vsub.s32 3, %v377
    %v379 = vrot.slane %v369, %v378
    %v380 = vlaneseq
    %v381 = vshrl.u32 %v380, 7
    %v382 = vsub.s32 3, %v381
    %v383 = vrot.slane %v373, %v382
    %v384 = vmul.f32 %v267, %v379
    %v385 = vmul.f32 %v267, %v383
    %v386 = vadd.f32 %v364, %v384
    %v387 = vadd.f32 %v365, %v385
    %v390 = vcombine.low %v386, %v387
    %s392 = scalar_lea.vmem [#allocation3], 8
    %393 = vst [vmem:[%s392] sm:$0xff] %v390
    // Predicated region
    $region38: #{tpu_custom_call.1} parent=1 // pred_check
      _
    $region39: #{tpu_custom_call.1} parent=1 // pred_check_branch
      %395 = sbr.rel (0) target = $region41
    $region40: #{tpu_custom_call.1} parent=1 // pred_region
      %s397 = ssub.s32 256, 256
      %398 = vsyncadd [#allocation4], %s397
      %s399 = sshll.u32 [#allocation3], 4
      %s400 = int_to_ptr.vmem [resolvable:$true] %s399
      %405 = dma.vmem_to_hbm [thread:$0]  %s400, 256, %s8, [#allocation4], 128, 128, 8
    $region41: #{tpu_custom_call.1} parent=1 // pred_fallthru
      _
    // Predicated region
    $region42: #{tpu_custom_call.1} parent=1 // pred_check
      _
    $region43: #{tpu_custom_call.1} parent=1 // pred_check_branch
      %407 = sbr.rel (0) target = $region45
    $region44: #{tpu_custom_call.1} parent=1 // pred_region
      %408 = dma.done [#allocation4], 256
    $region45: #{tpu_custom_call.1} parent=1 // pred_fallthru
      _
    %409 = vsyncpa [#allocation4], 1

</llo_original>
